<compile_context>
chip_gen: v6e
topology: v6e:2x2x1
jax: 0.10.0
libtpu: 0.0.40
codegen_flags: <defaults>
</compile_context>

<pallas_src>
import functools

import jax
import jax.numpy as jnp
from jax.experimental import pallas as pl
from jax.experimental.pallas import tpu as pltpu


def _round_up(n, m):
    return ((n + m - 1) // m) * m


def qnetwork_kernel(x_ref, w1_ref, b1_ref, w2_ref, b2_ref, w3_ref, b3_ref, o_ref):
    # x_ref : (F, TB) bf16   -- batch along lanes
    # w1    : (H, F) bf16, b1: (H, 1) f32
    # w2    : (H, H) bf16, b2: (H, 1) f32
    # w3    : (H, 1) f32,  b3: (1, 1) f32
    # o_ref : (1, TB) f32    -- lane-dense output row
    x = x_ref[...]

    h1 = jnp.dot(w1_ref[...], x, preferred_element_type=jnp.float32)
    h1 = jnp.maximum(h1 + b1_ref[...], 0.0)                       # (H, TB) f32

    h2 = jnp.dot(w2_ref[...], h1.astype(jnp.bfloat16),
                 preferred_element_type=jnp.float32)
    h2 = jnp.maximum(h2 + b2_ref[...], 0.0)                       # (H, TB) f32

    # fc3 (N=1): VPU multiply + sublane reduce instead of a 1-row MXU matmul.
    q = jnp.sum(h2 * w3_ref[...], axis=0, keepdims=True) + b3_ref[...]  # (1, TB)
    o_ref[...] = q.astype(o_ref.dtype)


@functools.partial(jax.jit, static_argnames=("tb",))
def qnetwork_forward(x, params, *, tb=8192):
    """x: (B, state_dim+action_dim) float32. Returns (B, 1) float32."""
    w1, b1, w2, b2, w3, b3 = params
    B, F = x.shape

    # Batch tile: a multiple of the 128-lane width, capped at `tb`; pad B up so
    # the grid divides evenly (padded rows are sliced off below).
    TB = min(tb, _round_up(B, 128))
    B_pad = _round_up(B, TB)
    grid = (B_pad // TB,)

    # Batch-in-lanes layout: (F, B_pad) in bf16 (halves streamed HBM bytes).
    xt = jnp.zeros((F, B_pad), jnp.bfloat16).at[:, :B].set(x.T.astype(jnp.bfloat16))

    # Cast MXU weights to bf16 once (outside the grid loop).
    w1b = w1.astype(jnp.bfloat16)
    w2b = w2.astype(jnp.bfloat16)

    # Weights/biases stay VMEM-resident across the whole grid.
    resident = lambda arr: pl.BlockSpec(arr.shape, lambda i: (0, 0))

    out = pl.pallas_call(
        qnetwork_kernel,
        out_shape=jax.ShapeDtypeStruct((1, B_pad), jnp.float32),
        grid=grid,
        in_specs=[
            pl.BlockSpec((F, TB), lambda i: (0, i)),   # streamed activations
            resident(w1b), resident(b1),
            resident(w2b), resident(b2),
            resident(w3), resident(b3),
        ],
        out_specs=pl.BlockSpec((1, TB), lambda i: (0, i)),
        compiler_params=pltpu.CompilerParams(
            dimension_semantics=("parallel",)),        # megacore sharding
    )(xt, w1b, b1, w2b, b2, w3, b3)

    return out[0, :B].reshape(B, 1)


def init_params(key, state_dim=3, action_dim=1, hidden_dim=32):
    """nn.Linear-style U(-1/sqrt(fan_in), 1/sqrt(fan_in)) init.

    Layout chosen for the batch-in-lanes kernel:
      w1: (H, F)  [= torch fc1.weight], b1: (H, 1)
      w2: (H, H)  [= torch fc2.weight], b2: (H, 1)
      w3: (H, 1)  [= torch fc3.weight.T], b3: (1, 1)
    """
    F, H = state_dim + action_dim, hidden_dim
    shapes = [((H, F), F), ((H, 1), F),
              ((H, H), H), ((H, 1), H),
              ((H, 1), H), ((1, 1), H)]
    params = []
    for shape, fan_in in shapes:
        key, k = jax.random.split(key)
        bound = 1.0 / jnp.sqrt(float(fan_in))
        params.append(jax.random.uniform(k, shape, jnp.float32, -bound, bound))
    return tuple(params)


def qnetwork_reference_f32(x, params):
    """Pure-f32 reference matching the PyTorch module exactly."""
    w1, b1, w2, b2, w3, b3 = params
    h1 = jnp.maximum(x @ w1.T + b1.T, 0.0)
    h2 = jnp.maximum(h1 @ w2.T + b2.T, 0.0)
    return h2 @ w3 + b3


def qnetwork_reference_bf16(x, params):
    """Reference with the same bf16-in / f32-accumulate precision as the kernel."""
    w1, b1, w2, b2, w3, b3 = params
    mm = lambda a, b: jnp.dot(a.astype(jnp.bfloat16), b.astype(jnp.bfloat16),
                              preferred_element_type=jnp.float32)
    h1 = jnp.maximum(mm(x, w1.T) + b1.T, 0.0)
    h2 = jnp.maximum(mm(h1, w2.T) + b2.T, 0.0)
    return jnp.sum(h2 * w3.T, axis=-1, keepdims=True) + b3


if __name__ == "__main__":
    key = jax.random.PRNGKey(0)
    kx, kx2, kp = jax.random.split(key, 3)

    state_dim, action_dim, hidden_dim = 3, 1, 32
    F = state_dim + action_dim
    params = init_params(kp, state_dim, action_dim, hidden_dim)

    # Small demo batch (single grid step after padding to 128 lanes).
    x = jax.random.normal(kx, (8, F), jnp.float32)
    out = jax.block_until_ready(qnetwork_forward(x, params))
    assert out.shape == (8, 1), out.shape
    assert jnp.allclose(out, qnetwork_reference_bf16(x, params), atol=1e-3, rtol=1e-3), \
        "mismatch vs bf16-matched reference"
    assert jnp.allclose(out, qnetwork_reference_f32(x, params), atol=5e-2, rtol=5e-2), \
        "mismatch vs f32 reference"

    # Larger batch (not a multiple of the tile) exercising the pipelined
    # parallel grid + padding path.
    x2 = jax.random.normal(kx2, (300, F), jnp.float32)
    out2 = jax.block_until_ready(qnetwork_forward(x2, params, tb=128))
    assert out2.shape == (300, 1), out2.shape
    assert jnp.allclose(out2, qnetwork_reference_bf16(x2, params), atol=1e-3, rtol=1e-3), \
        "mismatch vs bf16-matched reference (tiled)"
    assert jnp.allclose(out2, qnetwork_reference_f32(x2, params), atol=5e-2, rtol=5e-2), \
        "mismatch vs f32 reference (tiled)"

    print("KERNEL_OK")
</pallas_src>

<mosaic_0001>
module attributes {stable_mosaic.version = 11 : i64} {
  func.func @qnetwork_kernel(%arg0: i32, %arg1: memref<4x128xbf16, #tpu.memory_space<vmem>>, %arg2: memref<32x4xbf16, #tpu.memory_space<vmem>>, %arg3: memref<32x1xf32, #tpu.memory_space<vmem>>, %arg4: memref<32x32xbf16, #tpu.memory_space<vmem>>, %arg5: memref<32x1xf32, #tpu.memory_space<vmem>>, %arg6: memref<32x1xf32, #tpu.memory_space<vmem>>, %arg7: memref<1x1xf32, #tpu.memory_space<vmem>>, %arg8: memref<1x128xf32, #tpu.memory_space<vmem>>) attributes {dimension_semantics = [#tpu.dimension_semantics<parallel>], iteration_bounds = array<i64: 1>, scalar_prefetch = 0 : i64, scratch_operands = 0 : i64, tpu.core_type = #tpu.core_type<tc>, window_params = [{transform_indices = @transform_0, window_bounds = array<i64: 4, 128>}, {pipeline_mode = #tpu.pipeline_mode<synchronous>, transform_indices = @transform_1, window_bounds = array<i64: 32, 4>}, {pipeline_mode = #tpu.pipeline_mode<synchronous>, transform_indices = @transform_2, window_bounds = array<i64: 32, 1>}, {pipeline_mode = #tpu.pipeline_mode<synchronous>, transform_indices = @transform_3, window_bounds = array<i64: 32, 32>}, {pipeline_mode = #tpu.pipeline_mode<synchronous>, transform_indices = @transform_4, window_bounds = array<i64: 32, 1>}, {pipeline_mode = #tpu.pipeline_mode<synchronous>, transform_indices = @transform_5, window_bounds = array<i64: 32, 1>}, {pipeline_mode = #tpu.pipeline_mode<synchronous>, transform_indices = @transform_6, window_bounds = array<i64: 1, 1>}, {transform_indices = @transform_7, window_bounds = array<i64: 1, 128>}]} {
    %c0 = arith.constant 0 : index
    %c0_0 = arith.constant 0 : index
    %0 = vector.load %arg1[%c0, %c0_0] : memref<4x128xbf16, #tpu.memory_space<vmem>>, vector<4x128xbf16>
    %c0_1 = arith.constant 0 : index
    %c0_2 = arith.constant 0 : index
    %1 = vector.load %arg2[%c0_1, %c0_2] : memref<32x4xbf16, #tpu.memory_space<vmem>>, vector<32x4xbf16>
    %cst = arith.constant dense<0.000000e+00> : vector<32x128xf32>
    %2 = tpu.matmul %1, %0, %cst {dimension_numbers = #tpu.dot_dimension_numbers<[1], [0], [0], [1], [0, 0, 1, 1], [], []>} : vector<32x4xbf16>, vector<4x128xbf16>, vector<32x128xf32> -> vector<32x128xf32>
    %c0_3 = arith.constant 0 : index
    %c0_4 = arith.constant 0 : index
    %3 = vector.load %arg3[%c0_3, %c0_4] : memref<32x1xf32, #tpu.memory_space<vmem>>, vector<32x1xf32>
    %4 = vector.broadcast %3 : vector<32x1xf32> to vector<32x128xf32>
    %5 = arith.addf %2, %4 : vector<32x128xf32>
    %cst_5 = arith.constant 0.000000e+00 : f32
    %6 = vector.broadcast %cst_5 : f32 to vector<32x128xf32>
    %7 = arith.maximumf %5, %6 : vector<32x128xf32>
    %c0_6 = arith.constant 0 : index
    %c0_7 = arith.constant 0 : index
    %8 = vector.load %arg4[%c0_6, %c0_7] : memref<32x32xbf16, #tpu.memory_space<vmem>>, vector<32x32xbf16>
    %9 = arith.truncf %7 : vector<32x128xf32> to vector<32x128xbf16>
    %cst_8 = arith.constant dense<0.000000e+00> : vector<32x128xf32>
    %10 = tpu.matmul %8, %9, %cst_8 {dimension_numbers = #tpu.dot_dimension_numbers<[1], [0], [0], [1], [0, 0, 1, 1], [], []>} : vector<32x32xbf16>, vector<32x128xbf16>, vector<32x128xf32> -> vector<32x128xf32>
    %c0_9 = arith.constant 0 : index
    %c0_10 = arith.constant 0 : index
    %11 = vector.load %arg5[%c0_9, %c0_10] : memref<32x1xf32, #tpu.memory_space<vmem>>, vector<32x1xf32>
    %12 = vector.broadcast %11 : vector<32x1xf32> to vector<32x128xf32>
    %13 = arith.addf %10, %12 : vector<32x128xf32>
    %cst_11 = arith.constant 0.000000e+00 : f32
    %14 = vector.broadcast %cst_11 : f32 to vector<32x128xf32>
    %15 = arith.maximumf %13, %14 : vector<32x128xf32>
    %c0_12 = arith.constant 0 : index
    %c0_13 = arith.constant 0 : index
    %16 = vector.load %arg6[%c0_12, %c0_13] : memref<32x1xf32, #tpu.memory_space<vmem>>, vector<32x1xf32>
    %17 = vector.broadcast %16 : vector<32x1xf32> to vector<32x128xf32>
    %18 = arith.mulf %15, %17 : vector<32x128xf32>
    %cst_14 = arith.constant dense<0.000000e+00> : vector<128xf32>
    %19 = vector.multi_reduction <add>, %18, %cst_14 [0] : vector<32x128xf32> to vector<128xf32>
    %20 = vector.shape_cast %19 : vector<128xf32> to vector<1x128xf32>
    %c0_15 = arith.constant 0 : index
    %c0_16 = arith.constant 0 : index
    %21 = vector.load %arg7[%c0_15, %c0_16] : memref<1x1xf32, #tpu.memory_space<vmem>>, vector<1x1xf32>
    %22 = vector.broadcast %21 : vector<1x1xf32> to vector<1x128xf32>
    %23 = arith.addf %20, %22 : vector<1x128xf32>
    %c0_17 = arith.constant 0 : index
    %c0_18 = arith.constant 0 : index
    %24 = vector.load %arg8[%c0_17, %c0_18] : memref<1x128xf32, #tpu.memory_space<vmem>>, vector<1x128xf32>
    tpu.vector_store %arg8[%c0_17, %c0_18], %23 {strides = array<i32>} : memref<1x128xf32, #tpu.memory_space<vmem>>, vector<1x128xf32>,
    return
  }
  func.func @transform_0(%arg0: i32) -> (i32, i32) {
    %c0_i32 = arith.constant 0 : i32
    %c0_i32_0 = arith.constant 0 : i32
    return %c0_i32, %arg0 : i32, i32
  }
  func.func @transform_1(%arg0: i32) -> (i32, i32) {
    %c0_i32 = arith.constant 0 : i32
    %c0_i32_0 = arith.constant 0 : i32
    %c0_i32_1 = arith.constant 0 : i32
    return %c0_i32, %c0_i32_0 : i32, i32
  }
  func.func @transform_2(%arg0: i32) -> (i32, i32) {
    %c0_i32 = arith.constant 0 : i32
    %c0_i32_0 = arith.constant 0 : i32
    %c0_i32_1 = arith.constant 0 : i32
    return %c0_i32, %c0_i32_0 : i32, i32
  }
  func.func @transform_3(%arg0: i32) -> (i32, i32) {
    %c0_i32 = arith.constant 0 : i32
    %c0_i32_0 = arith.constant 0 : i32
    %c0_i32_1 = arith.constant 0 : i32
    return %c0_i32, %c0_i32_0 : i32, i32
  }
  func.func @transform_4(%arg0: i32) -> (i32, i32) {
    %c0_i32 = arith.constant 0 : i32
    %c0_i32_0 = arith.constant 0 : i32
    %c0_i32_1 = arith.constant 0 : i32
    return %c0_i32, %c0_i32_0 : i32, i32
  }
  func.func @transform_5(%arg0: i32) -> (i32, i32) {
    %c0_i32 = arith.constant 0 : i32
    %c0_i32_0 = arith.constant 0 : i32
    %c0_i32_1 = arith.constant 0 : i32
    return %c0_i32, %c0_i32_0 : i32, i32
  }
  func.func @transform_6(%arg0: i32) -> (i32, i32) {
    %c0_i32 = arith.constant 0 : i32
    %c0_i32_0 = arith.constant 0 : i32
    %c0_i32_1 = arith.constant 0 : i32
    return %c0_i32, %c0_i32_0 : i32, i32
  }
  func.func @transform_7(%arg0: i32) -> (i32, i32) {
    %c0_i32 = arith.constant 0 : i32
    %c0_i32_0 = arith.constant 0 : i32
    return %c0_i32, %arg0 : i32, i32
  }
}

</mosaic_0001>

<llo_original>
// kernel: qnetwork_forward.1
$region0: #{qnetwork_forward.1}
  #allocation0 [shape = 'u32[]', space=smem, size = 0x4, offset = 0x4, fixed_abs, tag = 'smem constant byte address 0x4 - core index']
  #allocation1 [shape = 'u32[144,128]{1,0:T(1,128)}', space=vmem, size = 0x12000, scoped, tag = 'internal scratch']
  #allocation2 [shape = 'f32[1,1]{1,0:T(1,128)S(1)}', space=vmem, size = 0x200, scoped, tag = 'scoped memory for qnetwork_forward.1']
  %s0 = inlined_call_operand.vmem [shape: bf16[4,128], index: 0, kind: input, shape index: {}]
  %s1 = inlined_call_operand.vmem [shape: bf16[32,4], index: 1, kind: input, shape index: {}]
  %s2 = inlined_call_operand.vmem [shape: f32[32,1], index: 2, kind: input, shape index: {}]
  %s3 = inlined_call_operand.vmem [shape: bf16[32,32], index: 3, kind: input, shape index: {}]
  %s4 = inlined_call_operand.vmem [shape: f32[32,1], index: 4, kind: input, shape index: {}]
  %s5 = inlined_call_operand.vmem [shape: f32[32,1], index: 5, kind: input, shape index: {}]
  %s6 = inlined_call_operand.<no memory space> [shape: f32[1,1], index: 6, kind: input, shape index: {}]
  %s7 = inlined_call_operand.vmem [shape: f32[1,128], index: 7, kind: output, shape index: {}]
  %s8 = sld [smem:[#allocation0]]
  $region38: #{qnetwork_forward.1} parent=0
    _
  %s10 = ssub.s32 1, %s8
  %s11 = scalar_select 0, %s10, %s8
  %v12 = vstv %s6
  %13 = vst [vmem:[#allocation2] sm:$0x1] %v12
  // Predicated region
  $region2: #{qnetwork_forward.1} parent=0 // pred_check
    _
  $region3: #{qnetwork_forward.1} parent=0 // pred_check_branch
    %15 = sbr.rel (0) target = $region5
  $region4: #{qnetwork_forward.1} parent=0 // pred_region
    _
  $region5: #{qnetwork_forward.1} parent=0 // pred_fallthru
    _
  // Predicated region
  $region6: #{qnetwork_forward.1} parent=0 // pred_check
    _
  $region7: #{qnetwork_forward.1} parent=0 // pred_check_branch
    %17 = sbr.rel (0) target = $region9
  $region8: #{qnetwork_forward.1} parent=0 // pred_region
    _
  $region9: #{qnetwork_forward.1} parent=0 // pred_fallthru
    _
  // Predicated region
  $region10: #{qnetwork_forward.1} parent=0 // pred_check
    _
  $region11: #{qnetwork_forward.1} parent=0 // pred_check_branch
    %19 = sbr.rel (0) target = $region13
  $region12: #{qnetwork_forward.1} parent=0 // pred_region
    _
  $region13: #{qnetwork_forward.1} parent=0 // pred_fallthru
    _
  // Predicated region
  $region14: #{qnetwork_forward.1} parent=0 // pred_check
    _
  $region15: #{qnetwork_forward.1} parent=0 // pred_check_branch
    %21 = sbr.rel (0) target = $region17
  $region16: #{qnetwork_forward.1} parent=0 // pred_region
    _
  $region17: #{qnetwork_forward.1} parent=0 // pred_fallthru
    _
  // Predicated region
  $region18: #{qnetwork_forward.1} parent=0 // pred_check
    _
  $region19: #{qnetwork_forward.1} parent=0 // pred_check_branch
    %23 = sbr.rel (0) target = $region21
  $region20: #{qnetwork_forward.1} parent=0 // pred_region
    _
  $region21: #{qnetwork_forward.1} parent=0 // pred_fallthru
    _
  // Predicated region
  $region22: #{qnetwork_forward.1} parent=0 // pred_check
    _
  $region23: #{qnetwork_forward.1} parent=0 // pred_check_branch
    %25 = sbr.rel (0) target = $region25
  $region24: #{qnetwork_forward.1} parent=0 // pred_region
    _
  $region25: #{qnetwork_forward.1} parent=0 // pred_fallthru
    _
  // Predicated region
  $region26: #{qnetwork_forward.1} parent=0 // pred_check
    _
  $region27: #{qnetwork_forward.1} parent=0 // pred_check_branch
    %27 = sbr.rel (0) target = $region29
  $region28: #{qnetwork_forward.1} parent=0 // pred_region
    _
  $region29: #{qnetwork_forward.1} parent=0 // pred_fallthru
    _
  %v29 = vld [vmem:[%s0] sm:$0x3]
  %v30 = vld [vmem:[%s1] sm:$0xf]
  %v31 = vld [vmem:[%s1 + $0x4] sm:$0xf]
  %v32 = vld [vmem:[%s1 + $0x8] sm:$0xf]
  %v33 = vld [vmem:[%s1 + $0xc] sm:$0xf]
  %v34 = vld [vmem:[%s2] sm:$0xff]
  %v35 = vld [vmem:[%s2 + $0x8] sm:$0xff]
  %v36 = vld [vmem:[%s2 + $0x10] sm:$0xff]
  %v37 = vld [vmem:[%s2 + $0x18] sm:$0xff]
  %39 = vset.pattern.permute.xlu0 0
  %40 = vperm.xlu0 %39, %v34
  %v41 = vpop.permute.xlu0 %40
  %44 = vset.pattern.permute.xlu0 0
  %45 = vperm.xlu0 %44, %v35
  %v46 = vpop.permute.xlu0 %45
  %49 = vset.pattern.permute.xlu0 0
  %50 = vperm.xlu0 %49, %v36
  %v51 = vpop.permute.xlu0 %50
  %54 = vset.pattern.permute.xlu0 0
  %55 = vperm.xlu0 %54, %v37
  %v56 = vpop.permute.xlu0 %55
  %v62 = vunpack.c.l.b16 %v30
  %v63 = vunpack.c.l.b16 %v31
  %v64 = vunpack.c.l.b16 %v32
  %v65 = vunpack.c.l.b16 %v33
  %v66 = vpack.c.b16 %v63, %v62
  %v67 = vpack.c.b16 %v65, %v64
  %vm68 = vcmask 31744
  %v70 = vsel %vm68, %v66, 0
  %v73 = vsel %vm68, %v67, 0
  %vm75 = vcmask 1041408
  %v77 = vsel %vm75, %v29, 0
  %79 = vmatprep.subr.bf16.mxu0 0
  %80 = vmatpush1.bf16.msra.mxu0 0
  %81 = vmatprep.subr.bf16.mxu0 0
  %82 = vmatpush1.bf16.msra.mxu0 0
  %83 = vmatprep.subr.bf16.mxu0 0
  %84 = vmatpush1.bf16.msra.mxu0 0
  %85 = vmatprep.subr.bf16.mxu0 0
  %86 = vmatpush1.bf16.msra.mxu0 0
  %87 = vmatprep.subr.bf16.mxu0 0
  %88 = vmatpush1.bf16.msra.mxu0 0
  %89 = vmatprep.subr.bf16.mxu0 0
  %90 = vmatpush1.bf16.msra.mxu0 0
  %91 = vmatprep.subr.bf16.mxu0 0
  %92 = vmatpush1.bf16.msra.mxu0 0
  %93 = vmatprep.subr.bf16.mxu0 0
  %94 = vmatpush1.bf16.msra.mxu0 %v77
  %95 = vmatprep.subr.bf16.mxu0 0
  %96 = vmatpush2.bf16.msra.mxu0 0
  %97 = vmatprep.subr.bf16.mxu0 0
  %98 = vmatpush2.bf16.msra.mxu0 0
  %99 = vmatprep.subr.bf16.mxu0 0
  %100 = vmatpush2.bf16.msra.mxu0 0
  %101 = vmatprep.subr.bf16.mxu0 0
  %102 = vmatpush2.bf16.msra.mxu0 0
  %103 = vmatprep.subr.bf16.mxu0 0
  %104 = vmatpush2.bf16.msra.mxu0 0
  %105 = vmatprep.subr.bf16.mxu0 0
  %106 = vmatpush2.bf16.msra.mxu0 0
  %107 = vmatprep.subr.bf16.mxu0 0
  %108 = vmatpush2.bf16.msra.mxu0 0
  %109 = vmatprep.subr.bf16.mxu0 0
  %110 = vmatpush2.bf16.msra.mxu0 0
  %111 = vmatprep.mubr.bf16.mxu0 0
  %112 = vmatmul.mubr.bf16.gmra.mxu0 %v70
  %v113 = vpop.f32.mrf.mxu0
  %v114 = vadd.f32 %v41, %v113
  %v115 = vpop.f32.mrf.mxu0
  %v116 = vpop.f32.mrf.mxu0
  %v117 = vadd.f32 %v46, %v116
  %v118 = vpop.f32.mrf.mxu0
  %119 = vmatprep.mubr.bf16.mxu0 0
  %120 = vmatmul.mubr.bf16.gmra.mxu0 %v73
  %v121 = vpop.f32.mrf.mxu0
  %v122 = vadd.f32 %v51, %v121
  %v123 = vpop.f32.mrf.mxu0
  %v124 = vpop.f32.mrf.mxu0
  %v125 = vadd.f32 %v56, %v124
  %v126 = vpop.f32.mrf.mxu0
  %127 = vdwg.mxu0
  %v128 = vmax.f32 %v114, 0.0
  %v129 = vmax.f32 %v117, 0.0
  %v130 = vmax.f32 %v122, 0.0
  %v131 = vmax.f32 %v125, 0.0
  %v132 = vld [vmem:[%s3] sm:$0xf]
  %v133 = vld [vmem:[%s3 + $0x4] sm:$0xf]
  %v134 = vld [vmem:[%s3 + $0x8] sm:$0xf]
  %v135 = vld [vmem:[%s3 + $0xc] sm:$0xf]
  %v136 = vpack.c.bf16 %v129, %v128
  %v137 = vpack.c.bf16 %v131, %v130
  %v138 = vld [vmem:[%s4] sm:$0xff]
  %v139 = vld [vmem:[%s4 + $0x8] sm:$0xff]
  %v140 = vld [vmem:[%s4 + $0x10] sm:$0xff]
  %v141 = vld [vmem:[%s4 + $0x18] sm:$0xff]
  %143 = vset.pattern.permute.xlu0 0
  %144 = vperm.xlu0 %143, %v138
  %v145 = vpop.permute.xlu0 %144
  %148 = vset.pattern.permute.xlu0 0
  %149 = vperm.xlu0 %148, %v139
  %v150 = vpop.permute.xlu0 %149
  %153 = vset.pattern.permute.xlu0 0
  %154 = vperm.xlu0 %153, %v140
  %v155 = vpop.permute.xlu0 %154
  %158 = vset.pattern.permute.xlu0 0
  %159 = vperm.xlu0 %158, %v141
  %v160 = vpop.permute.xlu0 %159
  %v166 = vunpack.c.l.b16 %v132
  %v167 = vunpack.c.l.b16 %v133
  %v168 = vunpack.c.l.b16 %v134
  %v169 = vunpack.c.l.b16 %v135
  %v170 = vpack.c.b16 %v167, %v166
  %v171 = vpack.c.b16 %v169, %v168
  %vm172 = vcmask 261120
  %v174 = vsel %vm172, %v170, 0
  %v177 = vsel %vm172, %v171, 0
  %179 = vmatprep.subr.bf16.mxu0 0
  %180 = vmatpush1.bf16.msra.mxu0 0
  %181 = vmatprep.subr.bf16.mxu0 0
  %182 = vmatpush1.bf16.msra.mxu0 0
  %183 = vmatprep.subr.bf16.mxu0 0
  %184 = vmatpush1.bf16.msra.mxu0 0
  %185 = vmatprep.subr.bf16.mxu0 0
  %186 = vmatpush1.bf16.msra.mxu0 0
  %187 = vmatprep.subr.bf16.mxu0 0
  %188 = vmatpush1.bf16.msra.mxu0 0
  %189 = vmatprep.subr.bf16.mxu0 0
  %190 = vmatpush1.bf16.msra.mxu0 0
  %191 = vmatprep.subr.bf16.mxu0 0
  %192 = vmatpush1.bf16.msra.mxu0 %v137
  %193 = vmatprep.subr.bf16.mxu0 0
  %194 = vmatpush1.bf16.msra.mxu0 %v136
  %195 = vmatprep.subr.bf16.mxu0 0
  %196 = vmatpush2.bf16.msra.mxu0 0
  %197 = vmatprep.subr.bf16.mxu0 0
  %198 = vmatpush2.bf16.msra.mxu0 0
  %199 = vmatprep.subr.bf16.mxu0 0
  %200 = vmatpush2.bf16.msra.mxu0 0
  %201 = vmatprep.subr.bf16.mxu0 0
  %202 = vmatpush2.bf16.msra.mxu0 0
  %203 = vmatprep.subr.bf16.mxu0 0
  %204 = vmatpush2.bf16.msra.mxu0 0
  %205 = vmatprep.subr.bf16.mxu0 0
  %206 = vmatpush2.bf16.msra.mxu0 0
  %207 = vmatprep.subr.bf16.mxu0 0
  %208 = vmatpush2.bf16.msra.mxu0 0
  %209 = vmatprep.subr.bf16.mxu0 0
  %210 = vmatpush2.bf16.msra.mxu0 0
  %211 = vmatprep.mubr.bf16.mxu0 0
  %212 = vmatmul.mubr.bf16.gmra.mxu0 %v174
  %v213 = vpop.f32.mrf.mxu0
  %v214 = vadd.f32 %v145, %v213
  %v215 = vpop.f32.mrf.mxu0
  %v216 = vpop.f32.mrf.mxu0
  %v217 = vadd.f32 %v150, %v216
  %v218 = vpop.f32.mrf.mxu0
  %219 = vmatprep.mubr.bf16.mxu0 0
  %220 = vmatmul.mubr.bf16.gmra.mxu0 %v177
  %v221 = vpop.f32.mrf.mxu0
  %v222 = vadd.f32 %v155, %v221
  %v223 = vpop.f32.mrf.mxu0
  %v224 = vpop.f32.mrf.mxu0
  %v225 = vadd.f32 %v160, %v224
  %v226 = vpop.f32.mrf.mxu0
  %227 = vdwg.mxu0
  %v228 = vmax.f32 %v214, 0.0
  %v229 = vmax.f32 %v217, 0.0
  %v230 = vmax.f32 %v222, 0.0
  %v231 = vmax.f32 %v225, 0.0
  %v232 = vld [vmem:[%s5] sm:$0xff]
  %v233 = vld [vmem:[%s5 + $0x8] sm:$0xff]
  %v234 = vld [vmem:[%s5 + $0x10] sm:$0xff]
  %v235 = vld [vmem:[%s5 + $0x18] sm:$0xff]
  %237 = vset.pattern.permute.xlu0 0
  %238 = vperm.xlu0 %237, %v232
  %v239 = vpop.permute.xlu0 %238
  %242 = vset.pattern.permute.xlu0 0
  %243 = vperm.xlu0 %242, %v233
  %v244 = vpop.permute.xlu0 %243
  %247 = vset.pattern.permute.xlu0 0
  %248 = vperm.xlu0 %247, %v234
  %v249 = vpop.permute.xlu0 %248
  %252 = vset.pattern.permute.xlu0 0
  %253 = vperm.xlu0 %252, %v235
  %v254 = vpop.permute.xlu0 %253
  %v256 = vmul.f32 %v228, %v239
  %v257 = vmul.f32 %v229, %v244
  %v258 = vmul.f32 %v230, %v249
  %v259 = vmul.f32 %v231, %v254
  %v260 = vadd.f32 %v256, %v257
  %v261 = vadd.f32 %v260, %v258
  %v262 = vadd.f32 %v261, %v259
  %v263 = vrot.slane %v262, 4
  %v264 = vadd.f32 %v262, %v263
  %v265 = vrot.slane %v264, 2
  %v266 = vadd.f32 %v264, %v265
  %v267 = vrot.slane %v266, 1
  %v268 = vadd.f32 %v266, %v267
  %v269 = vld [vmem:[#allocation2] sm:$0x1]
  %271 = vset.pattern.permute.xlu0 0
  %272 = vperm.xlu0 %271, %v269
  %v273 = vpop.permute.xlu0 %272
  %v275 = vlaneseq
  %v276 = vshrl.u32 %v275, 7
  %v277 = vsub.s32 0, %v276
  %v278 = vrot.slane %v273, %v277
  %v279 = vadd.f32 %v268, %v278
  %280 = vst [vmem:[%s7] sm:$0x1] %v279
  // Predicated region
  $region30: #{qnetwork_forward.1} parent=0 // pred_check
    _
  $region31: #{qnetwork_forward.1} parent=0 // pred_check_branch
    %282 = sbr.rel (0) target = $region33
  $region32: #{qnetwork_forward.1} parent=0 // pred_region
    _
  $region33: #{qnetwork_forward.1} parent=0 // pred_fallthru
    _
  // Predicated region
  $region34: #{qnetwork_forward.1} parent=0 // pred_check
    _
  $region35: #{qnetwork_forward.1} parent=0 // pred_check_branch
    %284 = sbr.rel (0) target = $region37
  $region36: #{qnetwork_forward.1} parent=0 // pred_region
    _
  $region37: #{qnetwork_forward.1} parent=0 // pred_fallthru
    _

</llo_original>
